<compile_context>
chip_gen: v6e
topology: v6e:2x2x1
jax: 0.10.0
libtpu: 0.0.40
codegen_flags: <defaults>
</compile_context>

<pallas_src>
import functools

import jax
import jax.numpy as jnp
from jax import lax
from jax.experimental import pallas as pl
from jax.experimental.pallas import tpu as pltpu

STATE_DIM = 8
ACTION_DIM = 1
HIDDEN_DIM = 64


def _round_up(n, m):
    return ((n + m - 1) // m) * m


def _qvalue_kernel(x_ref, a_ref, w1x_ref, w1a_ref, b1_ref,
                   w2_ref, b2_ref, w3_ref, b3_ref, out_ref):
    # x_ref: [TB, S] f32   a_ref: [TB, A=1] f32
    # w1x:   [S, H] bf16   w1a:   [1, H] f32   b1/b2: [1, H] f32
    # w2:    [H, H] bf16   w3:    [8, H] f32 (row 0 real, rows 1..7 zero)
    # b3:    [1] f32 in SMEM       out_ref: [1, TB] f32 (lane-dense)
    x = x_ref[...].astype(jnp.bfloat16)      # in-kernel cast, no extra HBM pass
    a = a_ref[...]                           # action stays f32 (exact)

    # fc1: MXU (bf16 in, f32 acc) for the state columns + VPU broadcast-mul
    # for the single action column, then f32 bias + ReLU.
    h1 = jnp.dot(x, w1x_ref[...], preferred_element_type=jnp.float32)   # [TB,H]
    h1 = h1 + a * w1a_ref[...]               # [TB,1] * [1,H] -> [TB,H]
    h1 = jnp.maximum(h1 + b1_ref[...], 0.0)

    # fc2: MXU bf16 operands, f32 accumulation, f32 bias + ReLU.
    h2 = jnp.dot(h1.astype(jnp.bfloat16), w2_ref[...],
                 preferred_element_type=jnp.float32)                    # [TB,H]
    h2 = jnp.maximum(h2 + b2_ref[...], 0.0)

    # fc_out: contract over H with the rhs transposed (q@k.T-style matmul) so
    # the result is born lane-dense as [8, TB]; row 0 is the real output.
    q = lax.dot_general(w3_ref[...], h2,
                        dimension_numbers=(((1,), (1,)), ((), ())),
                        preferred_element_type=jnp.float32)             # [8,TB]
    out_ref[...] = q[0:1, :] + b3_ref[0]


def _choose_tb(batch, tb):
    """Batch tile: multiple of 8, >=2 grid steps when possible (v7x split)."""
    tb = max(8, _round_up(tb, 8))
    half = _round_up(max(pl.cdiv(batch, 2), 1), 8)
    tile = min(tb, half)
    if tile >= batch:           # tiny batch: one block equal to the full array
        tile = batch
    return tile


@functools.partial(jax.jit, static_argnames=("tb",))
def qvalue_forward(x, a, params, *, tb=4096):
    """x: [B, state_dim], a: [B, action_dim] -> [B, 1] (float32)."""
    w1, b1, w2, b2, w3, b3 = params
    B, S = x.shape
    A = a.shape[1]
    H = w1.shape[0]

    # Split fc1 across the (state | action) concat and pre-transpose to
    # [in, out]; MXU operands cast to bf16, VPU operands stay f32.  These are
    # O(KB) ops on the weights only -- no batch-sized wrapper traffic.
    w1x = w1[:, :S].T.astype(jnp.bfloat16)                      # [S, H]  MXU
    w1a = w1[:, S:].T.astype(jnp.float32)                       # [1, H]  VPU
    w2t = w2.T.astype(jnp.bfloat16)                             # [H, H]  MXU
    w3p = jnp.pad(w3.reshape(1, H).astype(jnp.float32),
                  ((0, 7), (0, 0)))                             # [8, H]  MXU
    b1r = b1.reshape(1, H).astype(jnp.float32)
    b2r = b2.reshape(1, H).astype(jnp.float32)
    b3s = b3.reshape(1).astype(jnp.float32)                     # SMEM scalar

    TB = _choose_tb(B, tb)
    num_tiles = pl.cdiv(B, TB)

    def _resident(arr):
        return pl.BlockSpec(arr.shape, lambda i: (0, 0))

    out_tiles = pl.pallas_call(
        _qvalue_kernel,
        out_shape=jax.ShapeDtypeStruct((num_tiles, TB), jnp.float32),
        grid=(num_tiles,),
        in_specs=[
            pl.BlockSpec((TB, S), lambda i: (i, 0)),            # x tile
            pl.BlockSpec((TB, A), lambda i: (i, 0)),            # a tile
            _resident(w1x), _resident(w1a), _resident(b1r),
            _resident(w2t), _resident(b2r), _resident(w3p),
            pl.BlockSpec(memory_space=pltpu.MemorySpace.SMEM),  # b3 scalar
        ],
        out_specs=pl.BlockSpec((1, TB), lambda i: (i, 0)),      # lane-dense
        compiler_params=pltpu.CompilerParams(
            dimension_semantics=("parallel",),
            vmem_limit_bytes=48 * 1024 * 1024,
        ),
    )(x, a, w1x, w1a, b1r, w2t, b2r, w3p, b3s)

    # (num_tiles, TB) -> (B, 1); tail columns of the last tile are garbage
    # from the partial block and are sliced off here (tiny output-side op).
    return out_tiles.reshape(-1)[:B].reshape(B, 1)


def init_params(key):
    """Deterministic synthetic parameters with PyTorch Linear shapes."""
    ks = jax.random.split(key, 6)
    in1 = STATE_DIM + ACTION_DIM

    def lin_init(kw, kb, fan_in, fan_out):
        bound = 1.0 / jnp.sqrt(fan_in)
        w = jax.random.uniform(kw, (fan_out, fan_in), jnp.float32, -bound, bound)
        b = jax.random.uniform(kb, (fan_out,), jnp.float32, -bound, bound)
        return w, b

    w1, b1 = lin_init(ks[0], ks[1], in1, HIDDEN_DIM)
    w2, b2 = lin_init(ks[2], ks[3], HIDDEN_DIM, HIDDEN_DIM)
    w3, b3 = lin_init(ks[4], ks[5], HIDDEN_DIM, 1)
    return (w1, b1, w2, b2, w3, b3)


def reference_forward_f32(x, a, params):
    """Exact PyTorch-module semantics (f32 everywhere)."""
    w1, b1, w2, b2, w3, b3 = params
    cat = jnp.concatenate([x, a], axis=1)
    h1 = jax.nn.relu(cat @ w1.T + b1)
    h2 = jax.nn.relu(h1 @ w2.T + b2)
    return h2 @ w3.T + b3


def reference_forward_bf16(x, a, params):
    """Mirrors the kernel's bf16-operand / f32-accumulation arithmetic."""
    w1, b1, w2, b2, w3, b3 = params
    S = x.shape[1]
    w1x = w1[:, :S].T.astype(jnp.bfloat16)
    w1a = w1[:, S:].T.astype(jnp.float32)
    h1 = jnp.dot(x.astype(jnp.bfloat16), w1x, preferred_element_type=jnp.float32)
    h1 = h1 + a.astype(jnp.float32) * w1a
    h1 = jax.nn.relu(h1 + b1.reshape(1, -1))
    h2 = jnp.dot(h1.astype(jnp.bfloat16), w2.T.astype(jnp.bfloat16),
                 preferred_element_type=jnp.float32)
    h2 = jax.nn.relu(h2 + b2.reshape(1, -1))
    q = jnp.sum(h2 * w3.reshape(1, -1), axis=-1, keepdims=True)
    return q + b3


if __name__ == "__main__":
    key = jax.random.PRNGKey(0)
    kp, kx, ka = jax.random.split(key, 3)

    params = init_params(kp)

    # Small shapes consistent with the module (state_dim=8, action_dim=1).
    batch = 4
    x = jax.random.normal(kx, (batch, STATE_DIM), jnp.float32)
    a = jax.random.normal(ka, (batch, ACTION_DIM), jnp.float32)

    out = jax.block_until_ready(qvalue_forward(x, a, params))
    assert out.shape == (batch, 1)
    ref_bf16 = reference_forward_bf16(x, a, params)
    ref_f32 = reference_forward_f32(x, a, params)
    # Tight vs the bf16-matmul reference; loose vs exact f32 torch semantics.
    assert jnp.allclose(out, ref_bf16, atol=1e-3, rtol=1e-3), "mismatch (bf16 ref)"
    assert jnp.allclose(out, ref_f32, atol=5e-2, rtol=5e-2), "mismatch (f32 ref)"

    # Multi-step grid with a ragged last tile (no wrapper-side padding).
    batch2 = 300
    x2 = jax.random.normal(kx, (batch2, STATE_DIM), jnp.float32)
    a2 = jax.random.normal(ka, (batch2, ACTION_DIM), jnp.float32)
    ref2 = reference_forward_bf16(x2, a2, params)

    out2 = jax.block_until_ready(qvalue_forward(x2, a2, params, tb=128))
    assert out2.shape == (batch2, 1)
    assert jnp.allclose(out2, ref2, atol=1e-3, rtol=1e-3), "mismatch (tiled)"

    # Default tile path: TB capped at ~ceil(B/2) -> 2 grid steps (v7x split).
    out3 = jax.block_until_ready(qvalue_forward(x2, a2, params))
    assert out3.shape == (batch2, 1)
    assert jnp.allclose(out3, ref2, atol=1e-3, rtol=1e-3), "mismatch (2-step)"

    print("KERNEL_OK")
</pallas_src>

<mosaic_0001>
module attributes {stable_mosaic.version = 11 : i64} {
  func.func @_qvalue_kernel(%arg0: i32, %arg1: memref<4x8xf32, #tpu.memory_space<vmem>>, %arg2: memref<4x1xf32, #tpu.memory_space<vmem>>, %arg3: memref<8x64xbf16, #tpu.memory_space<vmem>>, %arg4: memref<1x64xf32, #tpu.memory_space<vmem>>, %arg5: memref<1x64xf32, #tpu.memory_space<vmem>>, %arg6: memref<64x64xbf16, #tpu.memory_space<vmem>>, %arg7: memref<1x64xf32, #tpu.memory_space<vmem>>, %arg8: memref<8x64xf32, #tpu.memory_space<vmem>>, %arg9: memref<1xf32, #tpu.memory_space<smem>>, %arg10: memref<1x4xf32, #tpu.memory_space<vmem>>) attributes {dimension_semantics = [#tpu.dimension_semantics<parallel>], iteration_bounds = array<i64: 1>, scalar_prefetch = 0 : i64, scratch_operands = 0 : i64, tpu.core_type = #tpu.core_type<tc>, window_params = [{transform_indices = @transform_0, window_bounds = array<i64: 4, 8>}, {transform_indices = @transform_1, window_bounds = array<i64: 4, 1>}, {pipeline_mode = #tpu.pipeline_mode<synchronous>, transform_indices = @transform_2, window_bounds = array<i64: 8, 64>}, {pipeline_mode = #tpu.pipeline_mode<synchronous>, transform_indices = @transform_3, window_bounds = array<i64: 1, 64>}, {pipeline_mode = #tpu.pipeline_mode<synchronous>, transform_indices = @transform_4, window_bounds = array<i64: 1, 64>}, {pipeline_mode = #tpu.pipeline_mode<synchronous>, transform_indices = @transform_5, window_bounds = array<i64: 64, 64>}, {pipeline_mode = #tpu.pipeline_mode<synchronous>, transform_indices = @transform_6, window_bounds = array<i64: 1, 64>}, {pipeline_mode = #tpu.pipeline_mode<synchronous>, transform_indices = @transform_7, window_bounds = array<i64: 8, 64>}, {transform_indices = @transform_8, window_bounds = array<i64: 1>}, {transform_indices = @transform_9, window_bounds = array<i64: 1, 4>}]} {
    %c0 = arith.constant 0 : index
    %c0_0 = arith.constant 0 : index
    %0 = vector.load %arg1[%c0, %c0_0] : memref<4x8xf32, #tpu.memory_space<vmem>>, vector<4x8xf32>
    %1 = arith.truncf %0 : vector<4x8xf32> to vector<4x8xbf16>
    %c0_1 = arith.constant 0 : index
    %c0_2 = arith.constant 0 : index
    %2 = vector.load %arg2[%c0_1, %c0_2] : memref<4x1xf32, #tpu.memory_space<vmem>>, vector<4x1xf32>
    %c0_3 = arith.constant 0 : index
    %c0_4 = arith.constant 0 : index
    %3 = vector.load %arg3[%c0_3, %c0_4] : memref<8x64xbf16, #tpu.memory_space<vmem>>, vector<8x64xbf16>
    %cst = arith.constant dense<0.000000e+00> : vector<4x64xf32>
    %4 = tpu.matmul %1, %3, %cst {dimension_numbers = #tpu.dot_dimension_numbers<[1], [0], [0], [1], [0, 0, 1, 1], [], []>} : vector<4x8xbf16>, vector<8x64xbf16>, vector<4x64xf32> -> vector<4x64xf32>
    %c0_5 = arith.constant 0 : index
    %c0_6 = arith.constant 0 : index
    %5 = vector.load %arg4[%c0_5, %c0_6] : memref<1x64xf32, #tpu.memory_space<vmem>>, vector<1x64xf32>
    %6 = vector.broadcast %2 : vector<4x1xf32> to vector<4x64xf32>
    %7 = vector.broadcast %5 : vector<1x64xf32> to vector<4x64xf32>
    %8 = arith.mulf %6, %7 : vector<4x64xf32>
    %9 = arith.addf %4, %8 : vector<4x64xf32>
    %c0_7 = arith.constant 0 : index
    %c0_8 = arith.constant 0 : index
    %10 = vector.load %arg5[%c0_7, %c0_8] : memref<1x64xf32, #tpu.memory_space<vmem>>, vector<1x64xf32>
    %11 = vector.broadcast %10 : vector<1x64xf32> to vector<4x64xf32>
    %12 = arith.addf %9, %11 : vector<4x64xf32>
    %cst_9 = arith.constant 0.000000e+00 : f32
    %13 = vector.broadcast %cst_9 : f32 to vector<4x64xf32>
    %14 = arith.maximumf %12, %13 : vector<4x64xf32>
    %15 = arith.truncf %14 : vector<4x64xf32> to vector<4x64xbf16>
    %c0_10 = arith.constant 0 : index
    %c0_11 = arith.constant 0 : index
    %16 = vector.load %arg6[%c0_10, %c0_11] : memref<64x64xbf16, #tpu.memory_space<vmem>>, vector<64x64xbf16>
    %cst_12 = arith.constant dense<0.000000e+00> : vector<4x64xf32>
    %17 = tpu.matmul %15, %16, %cst_12 {dimension_numbers = #tpu.dot_dimension_numbers<[1], [0], [0], [1], [0, 0, 1, 1], [], []>} : vector<4x64xbf16>, vector<64x64xbf16>, vector<4x64xf32> -> vector<4x64xf32>
    %c0_13 = arith.constant 0 : index
    %c0_14 = arith.constant 0 : index
    %18 = vector.load %arg7[%c0_13, %c0_14] : memref<1x64xf32, #tpu.memory_space<vmem>>, vector<1x64xf32>
    %19 = vector.broadcast %18 : vector<1x64xf32> to vector<4x64xf32>
    %20 = arith.addf %17, %19 : vector<4x64xf32>
    %cst_15 = arith.constant 0.000000e+00 : f32
    %21 = vector.broadcast %cst_15 : f32 to vector<4x64xf32>
    %22 = arith.maximumf %20, %21 : vector<4x64xf32>
    %c0_16 = arith.constant 0 : index
    %c0_17 = arith.constant 0 : index
    %23 = vector.load %arg8[%c0_16, %c0_17] : memref<8x64xf32, #tpu.memory_space<vmem>>, vector<8x64xf32>
    %cst_18 = arith.constant dense<0.000000e+00> : vector<8x4xf32>
    %24 = tpu.matmul %23, %22, %cst_18 {dimension_numbers = #tpu.dot_dimension_numbers<[1], [1], [0], [0], [0, 0, 1, 0], [], []>} : vector<8x64xf32>, vector<4x64xf32>, vector<8x4xf32> -> vector<8x4xf32>
    %25 = vector.extract_strided_slice %24 {offsets = [0, 0], sizes = [1, 4], strides = [1, 1]} : vector<8x4xf32> to vector<1x4xf32>
    %c0_19 = arith.constant 0 : index
    %26 = memref.load %arg9[%c0_19] : memref<1xf32, #tpu.memory_space<smem>>
    %27 = vector.broadcast %26 : f32 to vector<1x4xf32>
    %28 = arith.addf %25, %27 : vector<1x4xf32>
    %c0_20 = arith.constant 0 : index
    %c0_21 = arith.constant 0 : index
    %29 = vector.load %arg10[%c0_20, %c0_21] : memref<1x4xf32, #tpu.memory_space<vmem>>, vector<1x4xf32>
    tpu.vector_store %arg10[%c0_20, %c0_21], %28 {strides = array<i32>} : memref<1x4xf32, #tpu.memory_space<vmem>>, vector<1x4xf32>,
    return
  }
  func.func @transform_0(%arg0: i32) -> (i32, i32) {
    %c0_i32 = arith.constant 0 : i32
    %c0_i32_0 = arith.constant 0 : i32
    return %arg0, %c0_i32 : i32, i32
  }
  func.func @transform_1(%arg0: i32) -> (i32, i32) {
    %c0_i32 = arith.constant 0 : i32
    %c0_i32_0 = arith.constant 0 : i32
    return %arg0, %c0_i32 : i32, i32
  }
  func.func @transform_2(%arg0: i32) -> (i32, i32) {
    %c0_i32 = arith.constant 0 : i32
    %c0_i32_0 = arith.constant 0 : i32
    %c0_i32_1 = arith.constant 0 : i32
    return %c0_i32, %c0_i32_0 : i32, i32
  }
  func.func @transform_3(%arg0: i32) -> (i32, i32) {
    %c0_i32 = arith.constant 0 : i32
    %c0_i32_0 = arith.constant 0 : i32
    %c0_i32_1 = arith.constant 0 : i32
    return %c0_i32, %c0_i32_0 : i32, i32
  }
  func.func @transform_4(%arg0: i32) -> (i32, i32) {
    %c0_i32 = arith.constant 0 : i32
    %c0_i32_0 = arith.constant 0 : i32
    %c0_i32_1 = arith.constant 0 : i32
    return %c0_i32, %c0_i32_0 : i32, i32
  }
  func.func @transform_5(%arg0: i32) -> (i32, i32) {
    %c0_i32 = arith.constant 0 : i32
    %c0_i32_0 = arith.constant 0 : i32
    %c0_i32_1 = arith.constant 0 : i32
    return %c0_i32, %c0_i32_0 : i32, i32
  }
  func.func @transform_6(%arg0: i32) -> (i32, i32) {
    %c0_i32 = arith.constant 0 : i32
    %c0_i32_0 = arith.constant 0 : i32
    %c0_i32_1 = arith.constant 0 : i32
    return %c0_i32, %c0_i32_0 : i32, i32
  }
  func.func @transform_7(%arg0: i32) -> (i32, i32) {
    %c0_i32 = arith.constant 0 : i32
    %c0_i32_0 = arith.constant 0 : i32
    %c0_i32_1 = arith.constant 0 : i32
    return %c0_i32, %c0_i32_0 : i32, i32
  }
  func.func @transform_8(%arg0: i32) -> i32 {
    %c0_i32 = arith.constant 0 : i32
    %c0_i32_0 = arith.constant 0 : i32
    return %c0_i32 : i32
  }
  func.func @transform_9(%arg0: i32) -> (i32, i32) {
    %c0_i32 = arith.constant 0 : i32
    %c0_i32_0 = arith.constant 0 : i32
    return %arg0, %c0_i32 : i32, i32
  }
}

</mosaic_0001>

<llo_original>
// kernel: qvalue_forward.1
$region0: #{qvalue_forward.1}
  #allocation0 [shape = 'u32[]', space=smem, size = 0x4, offset = 0x4, fixed_abs, tag = 'smem constant byte address 0x4 - core index']
  #allocation1 [shape = 'u32[144,128]{1,0:T(1,128)}', space=vmem, size = 0x12000, scoped, tag = 'internal scratch']
  #allocation2 [shape = 'f32[1]{0:T(128)S(6)}', space=smem, size = 0x200, scoped, tag = 'scoped memory for qvalue_forward.1']
  %s0 = inlined_call_operand.vmem [shape: f32[4,8], index: 0, kind: input, shape index: {}]
  %s1 = inlined_call_operand.vmem [shape: f32[4,1], index: 1, kind: input, shape index: {}]
  %s2 = inlined_call_operand.vmem [shape: bf16[8,64], index: 2, kind: input, shape index: {}]
  %s3 = inlined_call_operand.vmem [shape: f32[1,64], index: 3, kind: input, shape index: {}]
  %s4 = inlined_call_operand.vmem [shape: f32[1,64], index: 4, kind: input, shape index: {}]
  %s5 = inlined_call_operand.vmem [shape: bf16[64,64], index: 5, kind: input, shape index: {}]
  %s6 = inlined_call_operand.vmem [shape: f32[1,64], index: 6, kind: input, shape index: {}]
  %s7 = inlined_call_operand.vmem [shape: f32[8,64], index: 7, kind: input, shape index: {}]
  %s8 = inlined_call_operand.<no memory space> [shape: f32[1], index: 8, kind: input, shape index: {}]
  %s9 = inlined_call_operand.hbm [shape: f32[1,4], index: 9, kind: output, shape index: {}]
  %s10 = sld [smem:[#allocation0]]
  $region46: #{qvalue_forward.1} parent=0
    _
  %s12 = ssub.s32 1, %s10
  %s13 = scalar_select 0, %s12, %s10
  %14 = sst [smem:[#allocation2]] %s8
  $region1: #{qvalue_forward.1} parent=0
    #allocation3 [shape = 'u8[512]{0}', space=vmem, size = 0x400, scoped, tag = 'output window, operand 0, single buffered']
    #allocation4 [shape = 's32[1]{0}', space=sflag, size = 0x4, scoped, tag = 'scoped memory for qvalue_forward.1']
    %15 = vsyncpa [#allocation4], 0
    // Predicated region
    $region2: #{qvalue_forward.1} parent=1 // pred_check
      _
    $region3: #{qvalue_forward.1} parent=1 // pred_check_branch
      %17 = sbr.rel (0) target = $region5
    $region4: #{qvalue_forward.1} parent=1 // pred_region
      _
    $region5: #{qvalue_forward.1} parent=1 // pred_fallthru
      _
    // Predicated region
    $region6: #{qvalue_forward.1} parent=1 // pred_check
      _
    $region7: #{qvalue_forward.1} parent=1 // pred_check_branch
      %19 = sbr.rel (0) target = $region9
    $region8: #{qvalue_forward.1} parent=1 // pred_region
      _
    $region9: #{qvalue_forward.1} parent=1 // pred_fallthru
      _
    // Predicated region
    $region10: #{qvalue_forward.1} parent=1 // pred_check
      _
    $region11: #{qvalue_forward.1} parent=1 // pred_check_branch
      %21 = sbr.rel (0) target = $region13
    $region12: #{qvalue_forward.1} parent=1 // pred_region
      _
    $region13: #{qvalue_forward.1} parent=1 // pred_fallthru
      _
    // Predicated region
    $region14: #{qvalue_forward.1} parent=1 // pred_check
      _
    $region15: #{qvalue_forward.1} parent=1 // pred_check_branch
      %23 = sbr.rel (0) target = $region17
    $region16: #{qvalue_forward.1} parent=1 // pred_region
      _
    $region17: #{qvalue_forward.1} parent=1 // pred_fallthru
      _
    // Predicated region
    $region18: #{qvalue_forward.1} parent=1 // pred_check
      _
    $region19: #{qvalue_forward.1} parent=1 // pred_check_branch
      %25 = sbr.rel (0) target = $region21
    $region20: #{qvalue_forward.1} parent=1 // pred_region
      _
    $region21: #{qvalue_forward.1} parent=1 // pred_fallthru
      _
    // Predicated region
    $region22: #{qvalue_forward.1} parent=1 // pred_check
      _
    $region23: #{qvalue_forward.1} parent=1 // pred_check_branch
      %27 = sbr.rel (0) target = $region25
    $region24: #{qvalue_forward.1} parent=1 // pred_region
      _
    $region25: #{qvalue_forward.1} parent=1 // pred_fallthru
      _
    // Predicated region
    $region26: #{qvalue_forward.1} parent=1 // pred_check
      _
    $region27: #{qvalue_forward.1} parent=1 // pred_check_branch
      %29 = sbr.rel (0) target = $region29
    $region28: #{qvalue_forward.1} parent=1 // pred_region
      _
    $region29: #{qvalue_forward.1} parent=1 // pred_fallthru
      _
    // Predicated region
    $region30: #{qvalue_forward.1} parent=1 // pred_check
      _
    $region31: #{qvalue_forward.1} parent=1 // pred_check_branch
      %31 = sbr.rel (0) target = $region33
    $region32: #{qvalue_forward.1} parent=1 // pred_region
      _
    $region33: #{qvalue_forward.1} parent=1 // pred_fallthru
      _
    // Predicated region
    $region34: #{qvalue_forward.1} parent=1 // pred_check
      _
    $region35: #{qvalue_forward.1} parent=1 // pred_check_branch
      %33 = sbr.rel (0) target = $region37
    $region36: #{qvalue_forward.1} parent=1 // pred_region
      _
    $region37: #{qvalue_forward.1} parent=1 // pred_fallthru
      _
    %v35 = vld [vmem:[%s0] sm:$0xf]
    %v36 = vpack.c.bf16 %v35, %v35
    %v37 = vld [vmem:[%s1] sm:$0xf]
    %v38 = vld [vmem:[%s2] sm:$0xf]
    %v39 = vld [vmem:[%s3] sm:$0x1]
    %41 = vset.pattern.permute.xlu0 0
    %42 = vperm.xlu0 %41, %v37
    %v43 = vpop.permute.xlu0 %42
    %v46 = vlaneseq
    %v47 = vshrl.u32 %v46, 7
    %v48 = vsub.s32 0, %v47
    %v49 = vrot.slane %v39, %v48
    %v51 = vmul.f32 %v43, %v49
    %vm52 = vcmask 64512
    %v54 = vsel %vm52, %v36, 0
    %vm56 = vcmask 1043456
    %v58 = vsel %vm56, %v38, 0
    %60 = vmatprep.subr.bf16.mxu0 0
    %61 = vmatpush1.bf16.msra.mxu0 0
    %62 = vmatprep.subr.bf16.mxu0 0
    %63 = vmatpush1.bf16.msra.mxu0 0
    %64 = vmatprep.subr.bf16.mxu0 0
    %65 = vmatpush1.bf16.msra.mxu0 0
    %66 = vmatprep.subr.bf16.mxu0 0
    %67 = vmatpush1.bf16.msra.mxu0 0
    %68 = vmatprep.subr.bf16.mxu0 0
    %69 = vmatpush1.bf16.msra.mxu0 0
    %70 = vmatprep.subr.bf16.mxu0 0
    %71 = vmatpush1.bf16.msra.mxu0 0
    %72 = vmatprep.subr.bf16.mxu0 0
    %73 = vmatpush1.bf16.msra.mxu0 0
    %74 = vmatprep.subr.bf16.mxu0 0
    %75 = vmatpush1.bf16.msra.mxu0 %v58
    %76 = vmatprep.subr.bf16.mxu0 0
    %77 = vmatpush2.bf16.msra.mxu0 0
    %78 = vmatprep.subr.bf16.mxu0 0
    %79 = vmatpush2.bf16.msra.mxu0 0
    %80 = vmatprep.subr.bf16.mxu0 0
    %81 = vmatpush2.bf16.msra.mxu0 0
    %82 = vmatprep.subr.bf16.mxu0 0
    %83 = vmatpush2.bf16.msra.mxu0 0
    %84 = vmatprep.subr.bf16.mxu0 0
    %85 = vmatpush2.bf16.msra.mxu0 0
    %86 = vmatprep.subr.bf16.mxu0 0
    %87 = vmatpush2.bf16.msra.mxu0 0
    %88 = vmatprep.subr.bf16.mxu0 0
    %89 = vmatpush2.bf16.msra.mxu0 0
    %90 = vmatprep.subr.bf16.mxu0 0
    %91 = vmatpush2.bf16.msra.mxu0 0
    %92 = vmatprep.mubr.bf16.mxu0 0
    %93 = vmatmul.mubr.bf16.gmra.mxu0 %v54
    %v94 = vpop.f32.mrf.mxu0
    %v95 = vadd.f32 %v51, %v94
    %v96 = vpop.f32.mrf.mxu0
    %v97 = vpop.f32.mrf.mxu0
    %v98 = vpop.f32.mrf.mxu0
    %99 = vdwg.mxu0
    %v100 = vld [vmem:[%s4] sm:$0x1]
    %v102 = vlaneseq
    %v103 = vshrl.u32 %v102, 7
    %v104 = vsub.s32 0, %v103
    %v105 = vrot.slane %v100, %v104
    %v107 = vadd.f32 %v95, %v105
    %v108 = vmax.f32 %v107, 0.0
    %v109 = vpack.c.bf16 %v108, %v108
    %v110 = vld [vmem:[%s5] sm:$0xf]
    %v111 = vld [vmem:[%s5 + $0x4] sm:$0xf]
    %v112 = vld [vmem:[%s5 + $0x8] sm:$0xf]
    %v113 = vld [vmem:[%s5 + $0xc] sm:$0xf]
    %v114 = vld [vmem:[%s5 + $0x10] sm:$0xf]
    %v115 = vld [vmem:[%s5 + $0x14] sm:$0xf]
    %v116 = vld [vmem:[%s5 + $0x18] sm:$0xf]
    %v117 = vld [vmem:[%s5 + $0x1c] sm:$0xf]
    %v118 = vld [vmem:[%s6] sm:$0x1]
    %v120 = vlaneseq
    %v121 = vshrl.u32 %v120, 7
    %v122 = vsub.s32 0, %v121
    %v123 = vrot.slane %v118, %v122
    %v133 = vunpack.c.l.b16 %v110
    %v134 = vunpack.c.l.b16 %v111
    %v135 = vunpack.c.l.b16 %v112
    %v136 = vunpack.c.l.b16 %v113
    %v137 = vunpack.c.l.b16 %v114
    %v138 = vunpack.c.l.b16 %v115
    %v139 = vunpack.c.l.b16 %v116
    %v140 = vunpack.c.l.b16 %v117
    %v141 = vpack.c.b16 %v134, %v133
    %v142 = vpack.c.b16 %v136, %v135
    %v143 = vpack.c.b16 %v138, %v137
    %v144 = vpack.c.b16 %v140, %v139
    %vm149 = vcmask 523264
    %v151 = vsel %vm149, %v109, 0
    %153 = vmatprep.subr.bf16.mxu0 0
    %154 = vmatpush1.bf16.msra.mxu0 0
    %155 = vmatprep.subr.bf16.mxu0 0
    %156 = vmatpush1.bf16.msra.mxu0 0
    %157 = vmatprep.subr.bf16.mxu0 0
    %158 = vmatpush1.bf16.msra.mxu0 0
    %159 = vmatprep.subr.bf16.mxu0 0
    %160 = vmatpush1.bf16.msra.mxu0 0
    %161 = vmatprep.subr.bf16.mxu0 0
    %162 = vmatpush1.bf16.msra.mxu0 %v144
    %163 = vmatprep.subr.bf16.mxu0 0
    %164 = vmatpush1.bf16.msra.mxu0 %v143
    %165 = vmatprep.subr.bf16.mxu0 0
    %166 = vmatpush1.bf16.msra.mxu0 %v142
    %167 = vmatprep.subr.bf16.mxu0 0
    %168 = vmatpush1.bf16.msra.mxu0 %v141
    %169 = vmatprep.subr.bf16.mxu0 0
    %170 = vmatpush2.bf16.msra.mxu0 0
    %171 = vmatprep.subr.bf16.mxu0 0
    %172 = vmatpush2.bf16.msra.mxu0 0
    %173 = vmatprep.subr.bf16.mxu0 0
    %174 = vmatpush2.bf16.msra.mxu0 0
    %175 = vmatprep.subr.bf16.mxu0 0
    %176 = vmatpush2.bf16.msra.mxu0 0
    %177 = vmatprep.subr.bf16.mxu0 0
    %178 = vmatpush2.bf16.msra.mxu0 0
    %179 = vmatprep.subr.bf16.mxu0 0
    %180 = vmatpush2.bf16.msra.mxu0 0
    %181 = vmatprep.subr.bf16.mxu0 0
    %182 = vmatpush2.bf16.msra.mxu0 0
    %183 = vmatprep.subr.bf16.mxu0 0
    %184 = vmatpush2.bf16.msra.mxu0 0
    %185 = vmatprep.mubr.bf16.mxu0 0
    %186 = vmatmul.mubr.bf16.gmra.mxu0 %v151
    %v187 = vpop.f32.mrf.mxu0
    %v188 = vadd.f32 %v123, %v187
    %v189 = vpop.f32.mrf.mxu0
    %v190 = vpop.f32.mrf.mxu0
    %v191 = vpop.f32.mrf.mxu0
    %192 = vdwg.mxu0
    %v193 = vmax.f32 %v188, 0.0
    %v194 = vld [vmem:[%s7] sm:$0xff]
    %v196 = vsel %vm149, %v194, 0
    %v199 = vsel %vm149, %v193, 0
    %201 = vmatprep.subr.mxu0 0.0
    %202 = vmatpush1.xpose.msra.mxu0 0.0
    %203 = vmatprep.subr.mxu0 0.0
    %204 = vmatpush1.xpose.msra.mxu0 0.0
    %205 = vmatprep.subr.mxu0 0.0
    %206 = vmatpush1.xpose.msra.mxu0 0.0
    %207 = vmatprep.subr.mxu0 0.0
    %208 = vmatpush1.xpose.msra.mxu0 0.0
    %209 = vmatprep.subr.mxu0 0.0
    %210 = vmatpush1.xpose.msra.mxu0 0.0
    %211 = vmatprep.subr.mxu0 0.0
    %212 = vmatpush1.xpose.msra.mxu0 0.0
    %213 = vmatprep.subr.mxu0 0.0
    %214 = vmatpush1.xpose.msra.mxu0 0.0
    %215 = vmatprep.subr.mxu0 0.0
    %216 = vmatpush1.xpose.msra.mxu0 0.0
    %217 = vmatprep.subr.mxu0 0.0
    %218 = vmatpush1.xpose.msra.mxu0 0.0
    %219 = vmatprep.subr.mxu0 0.0
    %220 = vmatpush1.xpose.msra.mxu0 0.0
    %221 = vmatprep.subr.mxu0 0.0
    %222 = vmatpush1.xpose.msra.mxu0 0.0
    %223 = vmatprep.subr.mxu0 0.0
    %224 = vmatpush1.xpose.msra.mxu0 0.0
    %225 = vmatprep.subr.mxu0 0.0
    %226 = vmatpush1.xpose.msra.mxu0 0.0
    %227 = vmatprep.subr.mxu0 0.0
    %228 = vmatpush1.xpose.msra.mxu0 0.0
    %229 = vmatprep.subr.mxu0 0.0
    %230 = vmatpush1.xpose.msra.mxu0 0.0
    %231 = vmatprep.subr.mxu0 0.0
    %232 = vmatpush1.xpose.msra.mxu0 %v199
    %233 = vmatprep.subr.mxu0 0.0
    %234 = vmatpush2.xpose.msra.mxu0 0.0
    %235 = vmatprep.subr.mxu0 0.0
    %236 = vmatpush2.xpose.msra.mxu0 0.0
    %237 = vmatprep.subr.mxu0 0.0
    %238 = vmatpush2.xpose.msra.mxu0 0.0
    %239 = vmatprep.subr.mxu0 0.0
    %240 = vmatpush2.xpose.msra.mxu0 0.0
    %241 = vmatprep.subr.mxu0 0.0
    %242 = vmatpush2.xpose.msra.mxu0 0.0
    %243 = vmatprep.subr.mxu0 0.0
    %244 = vmatpush2.xpose.msra.mxu0 0.0
    %245 = vmatprep.subr.mxu0 0.0
    %246 = vmatpush2.xpose.msra.mxu0 0.0
    %247 = vmatprep.subr.mxu0 0.0
    %248 = vmatpush2.xpose.msra.mxu0 0.0
    %249 = vmatprep.subr.mxu0 0.0
    %250 = vmatpush2.xpose.msra.mxu0 0.0
    %251 = vmatprep.subr.mxu0 0.0
    %252 = vmatpush2.xpose.msra.mxu0 0.0
    %253 = vmatprep.subr.mxu0 0.0
    %254 = vmatpush2.xpose.msra.mxu0 0.0
    %255 = vmatprep.subr.mxu0 0.0
    %256 = vmatpush2.xpose.msra.mxu0 0.0
    %257 = vmatprep.subr.mxu0 0.0
    %258 = vmatpush2.xpose.msra.mxu0 0.0
    %259 = vmatprep.subr.mxu0 0.0
    %260 = vmatpush2.xpose.msra.mxu0 0.0
    %261 = vmatprep.subr.mxu0 0.0
    %262 = vmatpush2.xpose.msra.mxu0 0.0
    %263 = vmatprep.subr.mxu0 0.0
    %264 = vmatpush2.xpose.msra.mxu0 0.0
    %265 = vmatprep.mubr.f32.mxu0 0.0
    %266 = vmatmul.mubr.f32.gmra.mxu0 %v196
    %v267 = vpop.f32.mrf.mxu0
    %v268 = vadd.f32 0.0, %v267
    %v269 = vpop.f32.mrf.mxu0
    %270 = vdwg.mxu0
    %s271 = sld [smem:[#allocation2]]
    %v272 = vstv %s271
    %v273 = vadd.f32 %v268, %v272
    %vm274 = vcmask 24576
    %275 = vst.msk [vmem:[#allocation3] sm:$0x1] %vm274, %v273
    // Predicated region
    $region38: #{qvalue_forward.1} parent=1 // pred_check
      _
    $region39: #{qvalue_forward.1} parent=1 // pred_check_branch
      %277 = sbr.rel (0) target = $region41
    $region40: #{qvalue_forward.1} parent=1 // pred_region
      %s279 = ssub.s32 16, 16
      %280 = vsyncadd [#allocation4], %s279
      %s282 = sshll.u32 [#allocation3], 4
      %s283 = int_to_ptr.vmem [resolvable:$true] %s282
      %285 = dma.vmem_to_hbm [thread:$0]  %s283, 16, %s9, [#allocation4]
    $region41: #{qvalue_forward.1} parent=1 // pred_fallthru
      _
    // Predicated region
    $region42: #{qvalue_forward.1} parent=1 // pred_check
      _
    $region43: #{qvalue_forward.1} parent=1 // pred_check_branch
      %287 = sbr.rel (0) target = $region45
    $region44: #{qvalue_forward.1} parent=1 // pred_region
      %288 = dma.done [#allocation4], 16
    $region45: #{qvalue_forward.1} parent=1 // pred_fallthru
      _
    %289 = vsyncpa [#allocation4], 1

</llo_original>
